<compile_context>
chip_gen: v5e
topology: v5e:2x2
jax: 0.10.0
libtpu: 0.0.40
codegen_flags: <defaults>
</compile_context>

<pallas_src>
import functools

import jax
import jax.numpy as jnp
from jax.experimental import pallas as pl
from jax.experimental.pallas import tpu as pltpu


BN_EPS = 1e-5
LEAKY_SLOPE = 0.2
LANE = 128


# --------------------------------------------------------------------------- kernels

def _accumulate_stats(y, stats_ref):
    # rows 0 / 1 of the (8, LANE) accumulator hold sum(y) / sum(y*y) over the batch.
    stats_ref[0:1, :] += jnp.sum(y, axis=0, keepdims=True)
    stats_ref[1:2, :] += jnp.sum(y * y, axis=0, keepdims=True)


def _bn_scale_shift(stats, gb, inv_n):
    # stats: (2, LANE) [sum, sumsq] over the full batch; gb: (2, LANE) [gamma, beta].
    mean = stats[0:1, :] * inv_n
    mean_sq = stats[1:2, :] * inv_n
    var = jnp.maximum(mean_sq - mean * mean, 0.0)        # guard cancellation -> no NaN
    scale = gb[0:1, :] * jax.lax.rsqrt(var + BN_EPS)     # gamma = 0 on pad lanes
    shift = gb[1:2, :] - mean * scale                    # beta
    return scale, shift


def _linear_stats_kernel(x_ref, w_ref, y_ref, stats_ref):
    """Block 0: y = x @ W0 (bf16 MXU, f32 acc); accumulate per-feature sum / sumsq."""
    @pl.when(pl.program_id(0) == 0)
    def _():
        stats_ref[...] = jnp.zeros_like(stats_ref)
    y = jnp.dot(x_ref[...].astype(jnp.bfloat16), w_ref[...],
                preferred_element_type=jnp.float32)       # (TN, LANE) f32
    _accumulate_stats(y, stats_ref)
    y_ref[...] = y


def _bn_act_linear_stats_kernel(n_valid, tile_rows, mask_rows,
                                y_in_ref, stats_in_ref, gb_ref, w_ref,
                                y_out_ref, stats_out_ref):
    """Block i>=1: BN(prev full-batch stats) + LeakyReLU + Linear_i + stats_i accumulation."""
    i = pl.program_id(0)

    @pl.when(i == 0)
    def _():
        stats_out_ref[...] = jnp.zeros_like(stats_out_ref)

    scale, shift = _bn_scale_shift(stats_in_ref[0:2, :], gb_ref[0:2, :], 1.0 / n_valid)
    h = y_in_ref[...] * scale + shift                     # fused BN affine (f32)
    h = jnp.maximum(h, LEAKY_SLOPE * h)                   # LeakyReLU(0.2)

    if mask_rows:   # static: keep batch-pad rows inert in the next layer's statistics
        row = jax.lax.broadcasted_iota(jnp.int32, h.shape, 0) + i * tile_rows
        h = jnp.where(row < n_valid, h, 0.0)

    y = jnp.dot(h.astype(jnp.bfloat16), w_ref[...],
                preferred_element_type=jnp.float32)
    _accumulate_stats(y, stats_out_ref)
    y_out_ref[...] = y


def _bn_act_tail_kernel(n_valid, y_in_ref, stats_in_ref, gb_ref, wt_ref, o_ref):
    """Tail: BN(last stats) + LeakyReLU + Linear(hidden, 1, bias=False)."""
    scale, shift = _bn_scale_shift(stats_in_ref[0:2, :], gb_ref[0:2, :], 1.0 / n_valid)
    h = y_in_ref[...] * scale + shift
    h = jnp.maximum(h, LEAKY_SLOPE * h)
    # 1-wide output: VPU multiply + XLU lane reduction instead of a wasted MXU pass.
    o_ref[...] = jnp.sum(h * wt_ref[0:1, :], axis=-1, keepdims=True)


# --------------------------------------------------------------------------- params

def make_discriminator_params(key, in_planes, n_layers=1, hidden=None):
    """Deterministic xavier-normal init mirroring the PyTorch __init__ shapes."""
    params = {"blocks": []}
    _hidden = in_planes if hidden is None else hidden
    for i in range(n_layers - 1):
        _in = in_planes if i == 0 else _hidden
        _hidden = int(_hidden // 1.5) if hidden is None else hidden
        key, kw = jax.random.split(key)
        std = (2.0 / (_in + _hidden)) ** 0.5               # xavier_normal_
        w = std * jax.random.normal(kw, (_hidden, _in), jnp.float32)
        key, kb = jax.random.split(key)
        bound = 1.0 / (_in ** 0.5)
        b = jax.random.uniform(kb, (_hidden,), jnp.float32, -bound, bound)
        gamma = jnp.ones((_hidden,), jnp.float32)           # fresh BN affine
        beta = jnp.zeros((_hidden,), jnp.float32)
        params["blocks"].append((w, b, gamma, beta))
    key, kt = jax.random.split(key)
    std_t = (2.0 / (_hidden + 1)) ** 0.5
    params["w_tail"] = std_t * jax.random.normal(kt, (1, _hidden), jnp.float32)
    return params


def pack_discriminator_params(params, lane=LANE):
    """Pack per-block lane-padded bf16 weights, f32 gamma/beta slabs, and the tail row.

    Pad lanes are exactly inert: zero weight columns, gamma = beta = 0, zero tail weight.
    The body Linear biases are intentionally dropped (training-mode BN cancels them)."""
    blocks = params["blocks"]
    w_list, gb_list = [], []
    for bi, (w, _b, g, be) in enumerate(blocks):
        hid, inp = w.shape
        assert hid <= lane and inp <= lane, "feature dims must fit one 128-lane tile"
        rows = inp if bi == 0 else lane                     # in_feat-deep first contraction
        wp = jnp.zeros((rows, lane), jnp.float32).at[:inp, :hid].set(w.T)
        w_list.append(wp.astype(jnp.bfloat16))              # bf16 MXU path, half the DMA
        gb = jnp.zeros((8, lane), jnp.float32)
        gb = gb.at[0, :hid].set(g).at[1, :hid].set(be)
        gb_list.append(gb)
    w_tail = params["w_tail"]                                # (1, hid_last)
    hid_last = w_tail.shape[1]
    wt_row = jnp.zeros((8, lane), jnp.float32).at[0, :hid_last].set(w_tail[0])
    return tuple(w_list), tuple(gb_list), wt_row


# --------------------------------------------------------------------------- wrapper

def _round_up(v, m):
    return ((v + m - 1) // m) * m


def _pick_batch_tile(n):
    # >=256 rows per dot amortizes the 256-wide MXU fill/drain on v6e/v7x; a 512-row f32
    # activation tile is 256 KiB, so the double-buffered working set stays well under
    # v7x's 64 MiB physical / 32 MiB scoped VMEM.
    if n >= 512:
        return 512
    return _round_up(max(n, 8), 8)


@jax.jit
def discriminator_forward(x, packed):
    w_list, gb_list, wt_row = packed
    n_blocks = len(w_list)
    n, in_feat = x.shape
    x = x.astype(jnp.float32)

    if n_blocks == 0:
        # TODO(synk): n_layers=1 (empty body) falls back to a plain XLA matvec.
        return x @ wt_row[0, :in_feat][:, None]

    tn = _pick_batch_tile(n)
    n_pad = _round_up(n, tn)
    num_tiles = n_pad // tn
    mask_rows = n_pad != n
    if mask_rows:
        x = jnp.pad(x, ((0, n_pad - n), (0, 0)))      # zero rows: inert in block-0 stats

    # per-step working set: ~4 double-buffered activation tiles + small parameter slabs
    vmem_limit = int(min(64 * 2 ** 20, max(4 * 2 ** 20, 10 * tn * LANE * 4)))

    act_spec = pl.BlockSpec((tn, LANE), lambda i: (i, 0))
    stats_spec = pl.BlockSpec((8, LANE), lambda i: (0, 0))

    def param_spec(shape):
        return pl.BlockSpec(shape, lambda i: (0, 0))

    arb = pltpu.CompilerParams(dimension_semantics=("arbitrary",),
                               vmem_limit_bytes=vmem_limit)
    par = pltpu.CompilerParams(dimension_semantics=("parallel",),
                               vmem_limit_bytes=vmem_limit)

    y_shape = jax.ShapeDtypeStruct((n_pad, LANE), jnp.float32)
    stats_shape = jax.ShapeDtypeStruct((8, LANE), jnp.float32)
    mm_cost = pl.CostEstimate(
        flops=2 * n_pad * LANE * LANE + 8 * n_pad * LANE,
        transcendentals=LANE,
        bytes_accessed=4 * (2 * n_pad * LANE) + 2 * LANE * LANE)

    # ---- block 0: Linear (bias folded away by BN) + full-batch stat accumulation
    y, stats = pl.pallas_call(
        _linear_stats_kernel,
        grid=(num_tiles,),
        in_specs=[pl.BlockSpec((tn, in_feat), lambda i: (i, 0)),   # un-padded features
                  param_spec(w_list[0].shape)],
        out_specs=(act_spec, stats_spec),
        out_shape=(y_shape, stats_shape),
        compiler_params=arb,
        cost_estimate=mm_cost,
    )(x, w_list[0])

    # ---- blocks 1..n-1: BN(prev stats) + LeakyReLU + Linear + stat accumulation (fused)
    for bi in range(1, n_blocks):
        y, stats = pl.pallas_call(
            functools.partial(_bn_act_linear_stats_kernel, n, tn, mask_rows),
            grid=(num_tiles,),
            in_specs=[act_spec, stats_spec,
                      param_spec((8, LANE)), param_spec((LANE, LANE))],
            out_specs=(act_spec, stats_spec),
            out_shape=(y_shape, stats_shape),
            compiler_params=arb,
            cost_estimate=mm_cost,
        )(y, stats, gb_list[bi - 1], w_list[bi])

    # ---- tail: BN(last stats) + LeakyReLU + Linear(hidden, 1, bias=False)
    out = pl.pallas_call(
        functools.partial(_bn_act_tail_kernel, n),
        grid=(num_tiles,),
        in_specs=[act_spec, stats_spec, param_spec((8, LANE)), param_spec((8, LANE))],
        out_specs=pl.BlockSpec((tn, 1), lambda i: (i, 0)),
        out_shape=jax.ShapeDtypeStruct((n_pad, 1), jnp.float32),
        compiler_params=par,
        cost_estimate=pl.CostEstimate(flops=6 * n_pad * LANE,
                                      transcendentals=LANE,
                                      bytes_accessed=4 * (n_pad * LANE + n_pad)),
    )(y, stats, gb_list[n_blocks - 1], wt_row)

    return out[:n]


# --------------------------------------------------------------------------- reference

def _reference_forward(x, params, matmul_dtype=jnp.float32):
    """Pure-JAX reference of the PyTorch forward (training-mode BN, Linear bias kept).

    matmul_dtype=bf16 mirrors the kernel's bf16 MXU path (tail stays f32, as in the kernel)."""
    h = x.astype(jnp.float32)
    for (w, b, g, be) in params["blocks"]:
        h = jnp.dot(h.astype(matmul_dtype), w.T.astype(matmul_dtype),
                    preferred_element_type=jnp.float32) + b
        mean = jnp.mean(h, axis=0, keepdims=True)
        var = jnp.mean((h - mean) ** 2, axis=0, keepdims=True)
        h = (h - mean) / jnp.sqrt(var + BN_EPS) * g + be
        h = jnp.where(h > 0, h, LEAKY_SLOPE * h)
    return h @ params["w_tail"].T


# --------------------------------------------------------------------------- demo

if __name__ == "__main__":
    key = jax.random.PRNGKey(0)
    in_planes = 48
    n_layers = 3          # body: 48->32 (BN+LReLU), 32->21 (BN+LReLU); tail: 21->1
    batch = 8

    kx, kp = jax.random.split(key)
    x = jax.random.normal(kx, (batch, in_planes), jnp.float32)
    params = make_discriminator_params(kp, in_planes, n_layers=n_layers, hidden=None)
    packed = pack_discriminator_params(params)

    out = discriminator_forward(x, packed)
    out = jax.block_until_ready(out)
    assert out.shape == (batch, 1)

    # Validate against a reference that mirrors the kernel's bf16 matmul path (tight),
    # and sanity-check against the full-f32 PyTorch-exact forward (loose, bf16 rounding).
    ref_bf16 = _reference_forward(x, params, matmul_dtype=jnp.bfloat16)
    ref_f32 = _reference_forward(x, params, matmul_dtype=jnp.float32)
    assert jnp.allclose(out, ref_bf16, atol=5e-3, rtol=5e-3), (out, ref_bf16)
    assert jnp.allclose(out, ref_f32, atol=1.5e-1, rtol=1.5e-1), (out, ref_f32)

    print("KERNEL_OK")
</pallas_src>

<mosaic_0001>
module attributes {stable_mosaic.version = 11 : i64} {
  func.func @_linear_stats_kernel(%arg0: i32, %arg1: memref<8x48xf32, #tpu.memory_space<vmem>>, %arg2: memref<48x128xbf16, #tpu.memory_space<vmem>>, %arg3: memref<8x128xf32, #tpu.memory_space<vmem>>, %arg4: memref<8x128xf32, #tpu.memory_space<vmem>>) attributes {dimension_semantics = [#tpu.dimension_semantics<arbitrary>], iteration_bounds = array<i64: 1>, scalar_prefetch = 0 : i64, scratch_operands = 0 : i64, tpu.core_type = #tpu.core_type<tc>, window_params = [{transform_indices = @transform_0, window_bounds = array<i64: 8, 48>}, {pipeline_mode = #tpu.pipeline_mode<synchronous>, transform_indices = @transform_1, window_bounds = array<i64: 48, 128>}, {transform_indices = @transform_2, window_bounds = array<i64: 8, 128>}, {pipeline_mode = #tpu.pipeline_mode<synchronous>, transform_indices = @transform_3, window_bounds = array<i64: 8, 128>}]} {
    %c0_i32 = arith.constant 0 : i32
    %0 = arith.cmpi eq, %arg0, %c0_i32 : i32
    %1 = arith.extui %0 : i1 to i32
    %c0_i32_0 = arith.constant 0 : i32
    %2 = arith.cmpi ne, %1, %c0_i32_0 : i32
    scf.if %2 {
      %cst_15 = arith.constant 0.000000e+00 : f32
      %19 = vector.broadcast %cst_15 : f32 to vector<8x128xf32>
      %c0_16 = arith.constant 0 : index
      %c0_17 = arith.constant 0 : index
      %20 = vector.load %arg4[%c0_16, %c0_17] : memref<8x128xf32, #tpu.memory_space<vmem>>, vector<8x128xf32>
      tpu.vector_store %arg4[%c0_16, %c0_17], %19 {strides = array<i32>} : memref<8x128xf32, #tpu.memory_space<vmem>>, vector<8x128xf32>,
    } else {
    }
    %c0 = arith.constant 0 : index
    %c0_1 = arith.constant 0 : index
    %3 = vector.load %arg1[%c0, %c0_1] : memref<8x48xf32, #tpu.memory_space<vmem>>, vector<8x48xf32>
    %4 = arith.truncf %3 : vector<8x48xf32> to vector<8x48xbf16>
    %c0_2 = arith.constant 0 : index
    %c0_3 = arith.constant 0 : index
    %5 = vector.load %arg2[%c0_2, %c0_3] : memref<48x128xbf16, #tpu.memory_space<vmem>>, vector<48x128xbf16>
    %cst = arith.constant dense<0.000000e+00> : vector<8x128xf32>
    %6 = tpu.matmul %4, %5, %cst {dimension_numbers = #tpu.dot_dimension_numbers<[1], [0], [0], [1], [0, 0, 1, 1], [], []>} : vector<8x48xbf16>, vector<48x128xbf16>, vector<8x128xf32> -> vector<8x128xf32>
    %c0_4 = arith.constant 0 : index
    %c0_5 = arith.constant 0 : index
    %7 = vector.load %arg4[%c0_4, %c0_5] : memref<8x128xf32, #tpu.memory_space<vmem>>, vector<1x128xf32>
    %cst_6 = arith.constant dense<0.000000e+00> : vector<128xf32>
    %8 = vector.multi_reduction <add>, %6, %cst_6 [0] : vector<8x128xf32> to vector<128xf32>
    %9 = vector.shape_cast %8 : vector<128xf32> to vector<1x128xf32>
    %10 = arith.addf %7, %9 : vector<1x128xf32>
    %c0_7 = arith.constant 0 : index
    %c0_8 = arith.constant 0 : index
    %11 = vector.load %arg4[%c0_7, %c0_8] : memref<8x128xf32, #tpu.memory_space<vmem>>, vector<1x128xf32>
    tpu.vector_store %arg4[%c0_7, %c0_8], %10 {strides = array<i32>} : memref<8x128xf32, #tpu.memory_space<vmem>>, vector<1x128xf32>,
    %c1 = arith.constant 1 : index
    %c0_9 = arith.constant 0 : index
    %12 = vector.load %arg4[%c1, %c0_9] : memref<8x128xf32, #tpu.memory_space<vmem>>, vector<1x128xf32>
    %13 = arith.mulf %6, %6 : vector<8x128xf32>
    %cst_10 = arith.constant dense<0.000000e+00> : vector<128xf32>
    %14 = vector.multi_reduction <add>, %13, %cst_10 [0] : vector<8x128xf32> to vector<128xf32>
    %15 = vector.shape_cast %14 : vector<128xf32> to vector<1x128xf32>
    %16 = arith.addf %12, %15 : vector<1x128xf32>
    %c1_11 = arith.constant 1 : index
    %c0_12 = arith.constant 0 : index
    %17 = vector.load %arg4[%c1_11, %c0_12] : memref<8x128xf32, #tpu.memory_space<vmem>>, vector<1x128xf32>
    tpu.vector_store %arg4[%c1_11, %c0_12], %16 {strides = array<i32>} : memref<8x128xf32, #tpu.memory_space<vmem>>, vector<1x128xf32>,
    %c0_13 = arith.constant 0 : index
    %c0_14 = arith.constant 0 : index
    %18 = vector.load %arg3[%c0_13, %c0_14] : memref<8x128xf32, #tpu.memory_space<vmem>>, vector<8x128xf32>
    tpu.vector_store %arg3[%c0_13, %c0_14], %6 {strides = array<i32>} : memref<8x128xf32, #tpu.memory_space<vmem>>, vector<8x128xf32>,
    return
  }
  func.func @transform_0(%arg0: i32) -> (i32, i32) {
    %c0_i32 = arith.constant 0 : i32
    %c0_i32_0 = arith.constant 0 : i32
    return %arg0, %c0_i32 : i32, i32
  }
  func.func @transform_1(%arg0: i32) -> (i32, i32) {
    %c0_i32 = arith.constant 0 : i32
    %c0_i32_0 = arith.constant 0 : i32
    %c0_i32_1 = arith.constant 0 : i32
    return %c0_i32, %c0_i32_0 : i32, i32
  }
  func.func @transform_2(%arg0: i32) -> (i32, i32) {
    %c0_i32 = arith.constant 0 : i32
    %c0_i32_0 = arith.constant 0 : i32
    return %arg0, %c0_i32 : i32, i32
  }
  func.func @transform_3(%arg0: i32) -> (i32, i32) {
    %c0_i32 = arith.constant 0 : i32
    %c0_i32_0 = arith.constant 0 : i32
    %c0_i32_1 = arith.constant 0 : i32
    return %c0_i32, %c0_i32_0 : i32, i32
  }
}

module attributes {stable_mosaic.version = 11 : i64} {
  func.func @_bn_act_tail_kernel(%arg0: i32, %arg1: memref<8x128xf32, #tpu.memory_space<vmem>>, %arg2: memref<8x128xf32, #tpu.memory_space<vmem>>, %arg3: memref<8x128xf32, #tpu.memory_space<vmem>>, %arg4: memref<8x128xf32, #tpu.memory_space<vmem>>, %arg5: memref<8x1xf32, #tpu.memory_space<vmem>>) attributes {dimension_semantics = [#tpu.dimension_semantics<parallel>], iteration_bounds = array<i64: 1>, scalar_prefetch = 0 : i64, scratch_operands = 0 : i64, tpu.core_type = #tpu.core_type<tc>, window_params = [{transform_indices = @transform_0, window_bounds = array<i64: 8, 128>}, {pipeline_mode = #tpu.pipeline_mode<synchronous>, transform_indices = @transform_1, window_bounds = array<i64: 8, 128>}, {pipeline_mode = #tpu.pipeline_mode<synchronous>, transform_indices = @transform_2, window_bounds = array<i64: 8, 128>}, {pipeline_mode = #tpu.pipeline_mode<synchronous>, transform_indices = @transform_3, window_bounds = array<i64: 8, 128>}, {transform_indices = @transform_4, window_bounds = array<i64: 8, 1>}]} {
    %c0 = arith.constant 0 : index
    %c0_0 = arith.constant 0 : index
    %0 = vector.load %arg2[%c0, %c0_0] : memref<8x128xf32, #tpu.memory_space<vmem>>, vector<2x128xf32>
    %c0_1 = arith.constant 0 : index
    %c0_2 = arith.constant 0 : index
    %1 = vector.load %arg3[%c0_1, %c0_2] : memref<8x128xf32, #tpu.memory_space<vmem>>, vector<2x128xf32>
    %2 = vector.extract_strided_slice %0 {offsets = [0, 0], sizes = [1, 128], strides = [1, 1]} : vector<2x128xf32> to vector<1x128xf32>
    %cst = arith.constant 1.250000e-01 : f32
    %3 = vector.broadcast %cst : f32 to vector<1x128xf32>
    %4 = arith.mulf %2, %3 : vector<1x128xf32>
    %5 = vector.extract_strided_slice %0 {offsets = [1, 0], sizes = [1, 128], strides = [1, 1]} : vector<2x128xf32> to vector<1x128xf32>
    %cst_3 = arith.constant 1.250000e-01 : f32
    %6 = vector.broadcast %cst_3 : f32 to vector<1x128xf32>
    %7 = arith.mulf %5, %6 : vector<1x128xf32>
    %8 = arith.mulf %4, %4 : vector<1x128xf32>
    %9 = arith.subf %7, %8 : vector<1x128xf32>
    %cst_4 = arith.constant 0.000000e+00 : f32
    %10 = vector.broadcast %cst_4 : f32 to vector<1x128xf32>
    %11 = arith.maximumf %9, %10 : vector<1x128xf32>
    %12 = vector.extract_strided_slice %1 {offsets = [0, 0], sizes = [1, 128], strides = [1, 1]} : vector<2x128xf32> to vector<1x128xf32>
    %cst_5 = arith.constant 9.99999974E-6 : f32
    %13 = vector.broadcast %cst_5 : f32 to vector<1x128xf32>
    %14 = arith.addf %11, %13 : vector<1x128xf32>
    %15 = math.rsqrt %14 : vector<1x128xf32>
    %16 = arith.mulf %12, %15 : vector<1x128xf32>
    %17 = vector.extract_strided_slice %1 {offsets = [1, 0], sizes = [1, 128], strides = [1, 1]} : vector<2x128xf32> to vector<1x128xf32>
    %18 = arith.mulf %4, %16 : vector<1x128xf32>
    %19 = arith.subf %17, %18 : vector<1x128xf32>
    %c0_6 = arith.constant 0 : index
    %c0_7 = arith.constant 0 : index
    %20 = vector.load %arg1[%c0_6, %c0_7] : memref<8x128xf32, #tpu.memory_space<vmem>>, vector<8x128xf32>
    %21 = vector.broadcast %16 : vector<1x128xf32> to vector<8x128xf32>
    %22 = arith.mulf %20, %21 : vector<8x128xf32>
    %23 = vector.broadcast %19 : vector<1x128xf32> to vector<8x128xf32>
    %24 = arith.addf %22, %23 : vector<8x128xf32>
    %cst_8 = arith.constant 2.000000e-01 : f32
    %25 = vector.broadcast %cst_8 : f32 to vector<8x128xf32>
    %26 = arith.mulf %25, %24 : vector<8x128xf32>
    %27 = arith.maximumf %24, %26 : vector<8x128xf32>
    %c0_9 = arith.constant 0 : index
    %c0_10 = arith.constant 0 : index
    %28 = vector.load %arg4[%c0_9, %c0_10] : memref<8x128xf32, #tpu.memory_space<vmem>>, vector<1x128xf32>
    %29 = vector.broadcast %28 : vector<1x128xf32> to vector<8x128xf32>
    %30 = arith.mulf %27, %29 : vector<8x128xf32>
    %cst_11 = arith.constant dense<0.000000e+00> : vector<8xf32>
    %31 = vector.multi_reduction <add>, %30, %cst_11 [1] : vector<8x128xf32> to vector<8xf32>
    %32 = vector.shape_cast %31 : vector<8xf32> to vector<8x1xf32>
    %c0_12 = arith.constant 0 : index
    %c0_13 = arith.constant 0 : index
    %33 = vector.load %arg5[%c0_12, %c0_13] : memref<8x1xf32, #tpu.memory_space<vmem>>, vector<8x1xf32>
    tpu.vector_store %arg5[%c0_12, %c0_13], %32 {strides = array<i32>} : memref<8x1xf32, #tpu.memory_space<vmem>>, vector<8x1xf32>,
    return
  }
  func.func @transform_0(%arg0: i32) -> (i32, i32) {
    %c0_i32 = arith.constant 0 : i32
    %c0_i32_0 = arith.constant 0 : i32
    return %arg0, %c0_i32 : i32, i32
  }
  func.func @transform_1(%arg0: i32) -> (i32, i32) {
    %c0_i32 = arith.constant 0 : i32
    %c0_i32_0 = arith.constant 0 : i32
    %c0_i32_1 = arith.constant 0 : i32
    return %c0_i32, %c0_i32_0 : i32, i32
  }
  func.func @transform_2(%arg0: i32) -> (i32, i32) {
    %c0_i32 = arith.constant 0 : i32
    %c0_i32_0 = arith.constant 0 : i32
    %c0_i32_1 = arith.constant 0 : i32
    return %c0_i32, %c0_i32_0 : i32, i32
  }
  func.func @transform_3(%arg0: i32) -> (i32, i32) {
    %c0_i32 = arith.constant 0 : i32
    %c0_i32_0 = arith.constant 0 : i32
    %c0_i32_1 = arith.constant 0 : i32
    return %c0_i32, %c0_i32_0 : i32, i32
  }
  func.func @transform_4(%arg0: i32) -> (i32, i32) {
    %c0_i32 = arith.constant 0 : i32
    %c0_i32_0 = arith.constant 0 : i32
    return %arg0, %c0_i32 : i32, i32
  }
}

module attributes {stable_mosaic.version = 11 : i64} {
  func.func @_bn_act_linear_stats_kernel(%arg0: i32, %arg1: memref<8x128xf32, #tpu.memory_space<vmem>>, %arg2: memref<8x128xf32, #tpu.memory_space<vmem>>, %arg3: memref<8x128xf32, #tpu.memory_space<vmem>>, %arg4: memref<128x128xbf16, #tpu.memory_space<vmem>>, %arg5: memref<8x128xf32, #tpu.memory_space<vmem>>, %arg6: memref<8x128xf32, #tpu.memory_space<vmem>>) attributes {dimension_semantics = [#tpu.dimension_semantics<arbitrary>], iteration_bounds = array<i64: 1>, scalar_prefetch = 0 : i64, scratch_operands = 0 : i64, tpu.core_type = #tpu.core_type<tc>, window_params = [{transform_indices = @transform_0, window_bounds = array<i64: 8, 128>}, {pipeline_mode = #tpu.pipeline_mode<synchronous>, transform_indices = @transform_1, window_bounds = array<i64: 8, 128>}, {pipeline_mode = #tpu.pipeline_mode<synchronous>, transform_indices = @transform_2, window_bounds = array<i64: 8, 128>}, {pipeline_mode = #tpu.pipeline_mode<synchronous>, transform_indices = @transform_3, window_bounds = array<i64: 128, 128>}, {transform_indices = @transform_4, window_bounds = array<i64: 8, 128>}, {pipeline_mode = #tpu.pipeline_mode<synchronous>, transform_indices = @transform_5, window_bounds = array<i64: 8, 128>}]} {
    %c0_i32 = arith.constant 0 : i32
    %0 = arith.cmpi eq, %arg0, %c0_i32 : i32
    %1 = arith.extui %0 : i1 to i32
    %c0_i32_0 = arith.constant 0 : i32
    %2 = arith.cmpi ne, %1, %c0_i32_0 : i32
    scf.if %2 {
      %cst_24 = arith.constant 0.000000e+00 : f32
      %46 = vector.broadcast %cst_24 : f32 to vector<8x128xf32>
      %c0_25 = arith.constant 0 : index
      %c0_26 = arith.constant 0 : index
      %47 = vector.load %arg6[%c0_25, %c0_26] : memref<8x128xf32, #tpu.memory_space<vmem>>, vector<8x128xf32>
      tpu.vector_store %arg6[%c0_25, %c0_26], %46 {strides = array<i32>} : memref<8x128xf32, #tpu.memory_space<vmem>>, vector<8x128xf32>,
    } else {
    }
    %c0 = arith.constant 0 : index
    %c0_1 = arith.constant 0 : index
    %3 = vector.load %arg2[%c0, %c0_1] : memref<8x128xf32, #tpu.memory_space<vmem>>, vector<2x128xf32>
    %c0_2 = arith.constant 0 : index
    %c0_3 = arith.constant 0 : index
    %4 = vector.load %arg3[%c0_2, %c0_3] : memref<8x128xf32, #tpu.memory_space<vmem>>, vector<2x128xf32>
    %5 = vector.extract_strided_slice %3 {offsets = [0, 0], sizes = [1, 128], strides = [1, 1]} : vector<2x128xf32> to vector<1x128xf32>
    %cst = arith.constant 1.250000e-01 : f32
    %6 = vector.broadcast %cst : f32 to vector<1x128xf32>
    %7 = arith.mulf %5, %6 : vector<1x128xf32>
    %8 = vector.extract_strided_slice %3 {offsets = [1, 0], sizes = [1, 128], strides = [1, 1]} : vector<2x128xf32> to vector<1x128xf32>
    %cst_4 = arith.constant 1.250000e-01 : f32
    %9 = vector.broadcast %cst_4 : f32 to vector<1x128xf32>
    %10 = arith.mulf %8, %9 : vector<1x128xf32>
    %11 = arith.mulf %7, %7 : vector<1x128xf32>
    %12 = arith.subf %10, %11 : vector<1x128xf32>
    %cst_5 = arith.constant 0.000000e+00 : f32
    %13 = vector.broadcast %cst_5 : f32 to vector<1x128xf32>
    %14 = arith.maximumf %12, %13 : vector<1x128xf32>
    %15 = vector.extract_strided_slice %4 {offsets = [0, 0], sizes = [1, 128], strides = [1, 1]} : vector<2x128xf32> to vector<1x128xf32>
    %cst_6 = arith.constant 9.99999974E-6 : f32
    %16 = vector.broadcast %cst_6 : f32 to vector<1x128xf32>
    %17 = arith.addf %14, %16 : vector<1x128xf32>
    %18 = math.rsqrt %17 : vector<1x128xf32>
    %19 = arith.mulf %15, %18 : vector<1x128xf32>
    %20 = vector.extract_strided_slice %4 {offsets = [1, 0], sizes = [1, 128], strides = [1, 1]} : vector<2x128xf32> to vector<1x128xf32>
    %21 = arith.mulf %7, %19 : vector<1x128xf32>
    %22 = arith.subf %20, %21 : vector<1x128xf32>
    %c0_7 = arith.constant 0 : index
    %c0_8 = arith.constant 0 : index
    %23 = vector.load %arg1[%c0_7, %c0_8] : memref<8x128xf32, #tpu.memory_space<vmem>>, vector<8x128xf32>
    %24 = vector.broadcast %19 : vector<1x128xf32> to vector<8x128xf32>
    %25 = arith.mulf %23, %24 : vector<8x128xf32>
    %26 = vector.broadcast %22 : vector<1x128xf32> to vector<8x128xf32>
    %27 = arith.addf %25, %26 : vector<8x128xf32>
    %cst_9 = arith.constant 2.000000e-01 : f32
    %28 = vector.broadcast %cst_9 : f32 to vector<8x128xf32>
    %29 = arith.mulf %28, %27 : vector<8x128xf32>
    %30 = arith.maximumf %27, %29 : vector<8x128xf32>
    %31 = arith.truncf %30 : vector<8x128xf32> to vector<8x128xbf16>
    %c0_10 = arith.constant 0 : index
    %c0_11 = arith.constant 0 : index
    %32 = vector.load %arg4[%c0_10, %c0_11] : memref<128x128xbf16, #tpu.memory_space<vmem>>, vector<128x128xbf16>
    %cst_12 = arith.constant dense<0.000000e+00> : vector<8x128xf32>
    %33 = tpu.matmul %31, %32, %cst_12 {dimension_numbers = #tpu.dot_dimension_numbers<[1], [0], [0], [1], [0, 0, 1, 1], [], []>} : vector<8x128xbf16>, vector<128x128xbf16>, vector<8x128xf32> -> vector<8x128xf32>
    %c0_13 = arith.constant 0 : index
    %c0_14 = arith.constant 0 : index
    %34 = vector.load %arg6[%c0_13, %c0_14] : memref<8x128xf32, #tpu.memory_space<vmem>>, vector<1x128xf32>
    %cst_15 = arith.constant dense<0.000000e+00> : vector<128xf32>
    %35 = vector.multi_reduction <add>, %33, %cst_15 [0] : vector<8x128xf32> to vector<128xf32>
    %36 = vector.shape_cast %35 : vector<128xf32> to vector<1x128xf32>
    %37 = arith.addf %34, %36 : vector<1x128xf32>
    %c0_16 = arith.constant 0 : index
    %c0_17 = arith.constant 0 : index
    %38 = vector.load %arg6[%c0_16, %c0_17] : memref<8x128xf32, #tpu.memory_space<vmem>>, vector<1x128xf32>
    tpu.vector_store %arg6[%c0_16, %c0_17], %37 {strides = array<i32>} : memref<8x128xf32, #tpu.memory_space<vmem>>, vector<1x128xf32>,
    %c1 = arith.constant 1 : index
    %c0_18 = arith.constant 0 : index
    %39 = vector.load %arg6[%c1, %c0_18] : memref<8x128xf32, #tpu.memory_space<vmem>>, vector<1x128xf32>
    %40 = arith.mulf %33, %33 : vector<8x128xf32>
    %cst_19 = arith.constant dense<0.000000e+00> : vector<128xf32>
    %41 = vector.multi_reduction <add>, %40, %cst_19 [0] : vector<8x128xf32> to vector<128xf32>
    %42 = vector.shape_cast %41 : vector<128xf32> to vector<1x128xf32>
    %43 = arith.addf %39, %42 : vector<1x128xf32>
    %c1_20 = arith.constant 1 : index
    %c0_21 = arith.constant 0 : index
    %44 = vector.load %arg6[%c1_20, %c0_21] : memref<8x128xf32, #tpu.memory_space<vmem>>, vector<1x128xf32>
    tpu.vector_store %arg6[%c1_20, %c0_21], %43 {strides = array<i32>} : memref<8x128xf32, #tpu.memory_space<vmem>>, vector<1x128xf32>,
    %c0_22 = arith.constant 0 : index
    %c0_23 = arith.constant 0 : index
    %45 = vector.load %arg5[%c0_22, %c0_23] : memref<8x128xf32, #tpu.memory_space<vmem>>, vector<8x128xf32>
    tpu.vector_store %arg5[%c0_22, %c0_23], %33 {strides = array<i32>} : memref<8x128xf32, #tpu.memory_space<vmem>>, vector<8x128xf32>,
    return
  }
  func.func @transform_0(%arg0: i32) -> (i32, i32) {
    %c0_i32 = arith.constant 0 : i32
    %c0_i32_0 = arith.constant 0 : i32
    return %arg0, %c0_i32 : i32, i32
  }
  func.func @transform_1(%arg0: i32) -> (i32, i32) {
    %c0_i32 = arith.constant 0 : i32
    %c0_i32_0 = arith.constant 0 : i32
    %c0_i32_1 = arith.constant 0 : i32
    return %c0_i32, %c0_i32_0 : i32, i32
  }
  func.func @transform_2(%arg0: i32) -> (i32, i32) {
    %c0_i32 = arith.constant 0 : i32
    %c0_i32_0 = arith.constant 0 : i32
    %c0_i32_1 = arith.constant 0 : i32
    return %c0_i32, %c0_i32_0 : i32, i32
  }
  func.func @transform_3(%arg0: i32) -> (i32, i32) {
    %c0_i32 = arith.constant 0 : i32
    %c0_i32_0 = arith.constant 0 : i32
    %c0_i32_1 = arith.constant 0 : i32
    return %c0_i32, %c0_i32_0 : i32, i32
  }
  func.func @transform_4(%arg0: i32) -> (i32, i32) {
    %c0_i32 = arith.constant 0 : i32
    %c0_i32_0 = arith.constant 0 : i32
    return %arg0, %c0_i32 : i32, i32
  }
  func.func @transform_5(%arg0: i32) -> (i32, i32) {
    %c0_i32 = arith.constant 0 : i32
    %c0_i32_0 = arith.constant 0 : i32
    %c0_i32_1 = arith.constant 0 : i32
    return %c0_i32, %c0_i32_0 : i32, i32
  }
}

</mosaic_0001>

<llo_original>
// kernel: discriminator_forward.4
$region0: #{discriminator_forward.4}
  #allocation0 [shape = 'u32[]', space=smem, size = 0x4, offset = 0x4, fixed_abs, tag = 'smem constant byte address 0x4 - core index']
  #allocation1 [shape = 'u32[72,128]{1,0:T(1,128)}', space=vmem, size = 0x9000, scoped, tag = 'internal scratch']
  %s0 = inlined_call_operand.vmem [shape: f32[8,128], index: 0, kind: input, shape index: {}]
  %s1 = inlined_call_operand.vmem [shape: f32[8,128], index: 1, kind: input, shape index: {}]
  %s2 = inlined_call_operand.vmem [shape: f32[8,128], index: 2, kind: input, shape index: {}]
  %s3 = inlined_call_operand.vmem [shape: bf16[128,128], index: 3, kind: input, shape index: {}]
  %s4 = inlined_call_operand.vmem [shape: f32[8,128], index: 4, kind: output, shape index: {0}]
  %s5 = inlined_call_operand.vmem [shape: f32[8,128], index: 5, kind: output, shape index: {1}]
  %6 = xla_tuple %s4, %s5
  %s7 = sld [smem:[#allocation0]]
  $region38: #{discriminator_forward.4} parent=0
    _
  %s9 = ssub.s32 1, %s7
  %s10 = scalar_select 0, %s9, %s7
  // Predicated region
  $region2: #{discriminator_forward.4} parent=0 // pred_check
    _
  $region3: #{discriminator_forward.4} parent=0 // pred_check_branch
    %12 = sbr.rel (0) target = $region5
  $region4: #{discriminator_forward.4} parent=0 // pred_region
    _
  $region5: #{discriminator_forward.4} parent=0 // pred_fallthru
    _
  // Predicated region
  $region6: #{discriminator_forward.4} parent=0 // pred_check
    _
  $region7: #{discriminator_forward.4} parent=0 // pred_check_branch
    %14 = sbr.rel (0) target = $region9
  $region8: #{discriminator_forward.4} parent=0 // pred_region
    _
  $region9: #{discriminator_forward.4} parent=0 // pred_fallthru
    _
  // Predicated region
  $region10: #{discriminator_forward.4} parent=0 // pred_check
    _
  $region11: #{discriminator_forward.4} parent=0 // pred_check_branch
    %16 = sbr.rel (0) target = $region13
  $region12: #{discriminator_forward.4} parent=0 // pred_region
    _
  $region13: #{discriminator_forward.4} parent=0 // pred_fallthru
    _
  // Predicated region
  $region14: #{discriminator_forward.4} parent=0 // pred_check
    _
  $region15: #{discriminator_forward.4} parent=0 // pred_check_branch
    %18 = sbr.rel (0) target = $region17
  $region16: #{discriminator_forward.4} parent=0 // pred_region
    _
  $region17: #{discriminator_forward.4} parent=0 // pred_fallthru
    _
  %p19 = scmp.eq.s32.totalorder 0, 0
  // Predicated region
  $region18: #{discriminator_forward.4} parent=0 // pred_check
    %p20 = pneg %p19
  $region19: #{discriminator_forward.4} parent=0 // pred_check_branch
    %22 = sbr.rel (%p20) target = $region21
  $region20: #{discriminator_forward.4} parent=0 // pred_region
    %23 = vst [vmem:[%s5] sm:$0xff] 0.0
  $region21: #{discriminator_forward.4} parent=0 // pred_fallthru
    _
  %v24 = vld [vmem:[%s1] sm:$0x3]
  %v25 = vld [vmem:[%s2] sm:$0x3]
  %v26 = vmul.f32 %v24, 0.125
  %v27 = vmul.f32 %v26, %v26
  %v29 = vrot.slane %v27, 7
  %v31 = vsub.f32 %v26, %v29
  %v32 = vmax.f32 %v31, 0.0
  %v33 = vadd.f32 %v32, 1e-05
  %v34 = vrsqrt.pop %v33
  %v35 = vmul.f32 %v34, %v33
  %v36 = vmul.f32 %v35, %v34
  %v37 = vmul.f32 0.5, %v36
  %v38 = vsub.f32 1.5, %v37
  %v39 = vmul.f32 %v34, %v38
  %vm40 = vweird.f32 %v33
  %vm41 = vweird.f32 %v34
  %vm42 = vmor %vm40, %vm41
  %v43 = vsel %vm42, %v34, %v39
  %v45 = vrot.slane %v43, 1
  %v47 = vmul.f32 %v25, %v45
  %v48 = vmul.f32 %v26, %v47
  %v50 = vrot.slane %v48, 7
  %v52 = vsub.f32 %v25, %v50
  %v53 = vld [vmem:[%s0] sm:$0xff]
  %v54 = vperm.slane %v47, 0
  %v55 = vmul.f32 %v53, %v54
  %v56 = vperm.slane %v52, 1
  %v57 = vadd.f32 %v55, %v56
  %v58 = vmul.f32 %v57, 0.2
  %v59 = vmax.f32 %v57, %v58
  %v60 = vpack.c.bf16 %v59, %v59
  %v61 = vld [vmem:[%s3] sm:$0xf]
  %v62 = vld [vmem:[%s3 + $0x4] sm:$0xf]
  %v63 = vld [vmem:[%s3 + $0x8] sm:$0xf]
  %v64 = vld [vmem:[%s3 + $0xc] sm:$0xf]
  %v65 = vld [vmem:[%s3 + $0x10] sm:$0xf]
  %v66 = vld [vmem:[%s3 + $0x14] sm:$0xf]
  %v67 = vld [vmem:[%s3 + $0x18] sm:$0xf]
  %v68 = vld [vmem:[%s3 + $0x1c] sm:$0xf]
  %v69 = vld [vmem:[%s3 + $0x20] sm:$0xf]
  %v70 = vld [vmem:[%s3 + $0x24] sm:$0xf]
  %v71 = vld [vmem:[%s3 + $0x28] sm:$0xf]
  %v72 = vld [vmem:[%s3 + $0x2c] sm:$0xf]
  %v73 = vld [vmem:[%s3 + $0x30] sm:$0xf]
  %v74 = vld [vmem:[%s3 + $0x34] sm:$0xf]
  %v75 = vld [vmem:[%s3 + $0x38] sm:$0xf]
  %v76 = vld [vmem:[%s3 + $0x3c] sm:$0xf]
  %v93 = vunpack.c.l.b16 %v61
  %v94 = vunpack.c.l.b16 %v62
  %v95 = vunpack.c.l.b16 %v63
  %v96 = vunpack.c.l.b16 %v64
  %v97 = vunpack.c.l.b16 %v65
  %v98 = vunpack.c.l.b16 %v66
  %v99 = vunpack.c.l.b16 %v67
  %v100 = vunpack.c.l.b16 %v68
  %v101 = vunpack.c.l.b16 %v69
  %v102 = vunpack.c.l.b16 %v70
  %v103 = vunpack.c.l.b16 %v71
  %v104 = vunpack.c.l.b16 %v72
  %v105 = vunpack.c.l.b16 %v73
  %v106 = vunpack.c.l.b16 %v74
  %v107 = vunpack.c.l.b16 %v75
  %v108 = vunpack.c.l.b16 %v76
  %v109 = vpack.c.b16 %v94, %v93
  %v110 = vpack.c.b16 %v96, %v95
  %v111 = vpack.c.b16 %v98, %v97
  %v112 = vpack.c.b16 %v100, %v99
  %v113 = vpack.c.b16 %v102, %v101
  %v114 = vpack.c.b16 %v104, %v103
  %v115 = vpack.c.b16 %v106, %v105
  %v116 = vpack.c.b16 %v108, %v107
  %125 = vmatpush.bf16.msra.mxu0 %v116
  %126 = vmatpush.bf16.msra.mxu0 %v115
  %127 = vmatpush.bf16.msra.mxu0 %v114
  %128 = vmatpush.bf16.msra.mxu0 %v113
  %129 = vmatpush.bf16.msra.mxu0 %v112
  %130 = vmatpush.bf16.msra.mxu0 %v111
  %131 = vmatpush.bf16.msra.mxu0 %v110
  %132 = vmatpush.bf16.msra.mxu0 %v109
  %133 = vmatmul.bf16.gmra.mxu0 %v60
  %v134 = vpop.f32.mrf.mxu0
  %v135 = vadd.f32 0.0, %v134
  %v136 = vpop.f32.mrf.mxu0
  %137 = vdwg.mxu0
  %v138 = vld [vmem:[%s5] sm:$0x1]
  %v139 = vrot.slane %v135, 4
  %v140 = vadd.f32 %v135, %v139
  %v141 = vrot.slane %v140, 2
  %v142 = vadd.f32 %v140, %v141
  %v143 = vrot.slane %v142, 1
  %v144 = vadd.f32 %v142, %v143
  %v145 = vadd.f32 %v138, %v144
  %146 = vst [vmem:[%s5] sm:$0x1] %v145
  %v147 = vld [vmem:[%s5 + $0x1] sm:$0x1]
  %v148 = vmul.f32 %v135, %v135
  %v149 = vrot.slane %v148, 4
  %v150 = vadd.f32 %v148, %v149
  %v151 = vrot.slane %v150, 2
  %v152 = vadd.f32 %v150, %v151
  %v153 = vrot.slane %v152, 1
  %v154 = vadd.f32 %v152, %v153
  %v155 = vadd.f32 %v147, %v154
  %156 = vst [vmem:[%s5 + $0x1] sm:$0x1] %v155
  %157 = vst [vmem:[%s4] sm:$0xff] %v135
  // Predicated region
  $region22: #{discriminator_forward.4} parent=0 // pred_check
    _
  $region23: #{discriminator_forward.4} parent=0 // pred_check_branch
    %159 = sbr.rel (0) target = $region25
  $region24: #{discriminator_forward.4} parent=0 // pred_region
    _
  $region25: #{discriminator_forward.4} parent=0 // pred_fallthru
    _
  // Predicated region
  $region26: #{discriminator_forward.4} parent=0 // pred_check
    _
  $region27: #{discriminator_forward.4} parent=0 // pred_check_branch
    %161 = sbr.rel (0) target = $region29
  $region28: #{discriminator_forward.4} parent=0 // pred_region
    _
  $region29: #{discriminator_forward.4} parent=0 // pred_fallthru
    _
  // Predicated region
  $region30: #{discriminator_forward.4} parent=0 // pred_check
    _
  $region31: #{discriminator_forward.4} parent=0 // pred_check_branch
    %163 = sbr.rel (0) target = $region33
  $region32: #{discriminator_forward.4} parent=0 // pred_region
    _
  $region33: #{discriminator_forward.4} parent=0 // pred_fallthru
    _
  // Predicated region
  $region34: #{discriminator_forward.4} parent=0 // pred_check
    _
  $region35: #{discriminator_forward.4} parent=0 // pred_check_branch
    %165 = sbr.rel (0) target = $region37
  $region36: #{discriminator_forward.4} parent=0 // pred_region
    _
  $region37: #{discriminator_forward.4} parent=0 // pred_fallthru
    _

// kernel: discriminator_forward.5
$region0: #{discriminator_forward.5}
  #allocation0 [shape = 'u32[]', space=smem, size = 0x4, offset = 0x4, fixed_abs, tag = 'smem constant byte address 0x4 - core index']
  #allocation1 [shape = 'u32[72,128]{1,0:T(1,128)}', space=vmem, size = 0x9000, scoped, tag = 'internal scratch']
  %s0 = inlined_call_operand.vmem [shape: f32[8,128], index: 0, kind: input, shape index: {}]
  %s1 = inlined_call_operand.vmem [shape: f32[8,128], index: 1, kind: input, shape index: {}]
  %s2 = inlined_call_operand.vmem [shape: f32[8,128], index: 2, kind: input, shape index: {}]
  %s3 = inlined_call_operand.vmem [shape: f32[8,128], index: 3, kind: input, shape index: {}]
  %s4 = inlined_call_operand.vmem [shape: f32[8,1], index: 4, kind: output, shape index: {}]
  %s5 = sld [smem:[#allocation0]]
  $region26: #{discriminator_forward.5} parent=0
    _
  %s7 = ssub.s32 1, %s5
  %s8 = scalar_select 0, %s7, %s5
  // Predicated region
  $region2: #{discriminator_forward.5} parent=0 // pred_check
    _
  $region3: #{discriminator_forward.5} parent=0 // pred_check_branch
    %10 = sbr.rel (0) target = $region5
  $region4: #{discriminator_forward.5} parent=0 // pred_region
    _
  $region5: #{discriminator_forward.5} parent=0 // pred_fallthru
    _
  // Predicated region
  $region6: #{discriminator_forward.5} parent=0 // pred_check
    _
  $region7: #{discriminator_forward.5} parent=0 // pred_check_branch
    %12 = sbr.rel (0) target = $region9
  $region8: #{discriminator_forward.5} parent=0 // pred_region
    _
  $region9: #{discriminator_forward.5} parent=0 // pred_fallthru
    _
  // Predicated region
  $region10: #{discriminator_forward.5} parent=0 // pred_check
    _
  $region11: #{discriminator_forward.5} parent=0 // pred_check_branch
    %14 = sbr.rel (0) target = $region13
  $region12: #{discriminator_forward.5} parent=0 // pred_region
    _
  $region13: #{discriminator_forward.5} parent=0 // pred_fallthru
    _
  // Predicated region
  $region14: #{discriminator_forward.5} parent=0 // pred_check
    _
  $region15: #{discriminator_forward.5} parent=0 // pred_check_branch
    %16 = sbr.rel (0) target = $region17
  $region16: #{discriminator_forward.5} parent=0 // pred_region
    _
  $region17: #{discriminator_forward.5} parent=0 // pred_fallthru
    _
  %v17 = vld [vmem:[%s1] sm:$0x3]
  %v18 = vld [vmem:[%s2] sm:$0x3]
  %v19 = vmul.f32 %v17, 0.125
  %v20 = vmul.f32 %v19, %v19
  %v22 = vrot.slane %v20, 7
  %v24 = vsub.f32 %v19, %v22
  %v25 = vmax.f32 %v24, 0.0
  %v26 = vadd.f32 %v25, 1e-05
  %v27 = vrsqrt.pop %v26
  %v28 = vmul.f32 %v27, %v26
  %v29 = vmul.f32 %v28, %v27
  %v30 = vmul.f32 0.5, %v29
  %v31 = vsub.f32 1.5, %v30
  %v32 = vmul.f32 %v27, %v31
  %vm33 = vweird.f32 %v26
  %vm34 = vweird.f32 %v27
  %vm35 = vmor %vm33, %vm34
  %v36 = vsel %vm35, %v27, %v32
  %v38 = vrot.slane %v36, 1
  %v40 = vmul.f32 %v18, %v38
  %v41 = vmul.f32 %v19, %v40
  %v43 = vrot.slane %v41, 7
  %v45 = vsub.f32 %v18, %v43
  %v46 = vld [vmem:[%s0] sm:$0xff]
  %v47 = vperm.slane %v40, 0
  %v48 = vmul.f32 %v46, %v47
  %v49 = vperm.slane %v45, 1
  %v50 = vadd.f32 %v48, %v49
  %v51 = vmul.f32 %v50, 0.2
  %v52 = vmax.f32 %v50, %v51
  %v53 = vld [vmem:[%s3] sm:$0x1]
  %v54 = vperm.slane %v53, 0
  %v55 = vmul.f32 %v52, %v54
  %56 = vadd.xlane.f32.xlu0 %v55
  %v57 = vpop.xlane.xlu0 %56
  %vm58 = vcmask 7168
  %59 = vst.msk [vmem:[%s4] sm:$0xff] %vm58, %v57
  // Predicated region
  $region18: #{discriminator_forward.5} parent=0 // pred_check
    _
  $region19: #{discriminator_forward.5} parent=0 // pred_check_branch
    %61 = sbr.rel (0) target = $region21
  $region20: #{discriminator_forward.5} parent=0 // pred_region
    _
  $region21: #{discriminator_forward.5} parent=0 // pred_fallthru
    _
  // Predicated region
  $region22: #{discriminator_forward.5} parent=0 // pred_check
    _
  $region23: #{discriminator_forward.5} parent=0 // pred_check_branch
    %63 = sbr.rel (0) target = $region25
  $region24: #{discriminator_forward.5} parent=0 // pred_region
    _
  $region25: #{discriminator_forward.5} parent=0 // pred_fallthru
    _

// kernel: discriminator_forward.3
$region0: #{discriminator_forward.3}
  #allocation0 [shape = 'u32[]', space=smem, size = 0x4, offset = 0x4, fixed_abs, tag = 'smem constant byte address 0x4 - core index']
  #allocation1 [shape = 'u32[72,128]{1,0:T(1,128)}', space=vmem, size = 0x9000, scoped, tag = 'internal scratch']
  %s0 = inlined_call_operand.hbm [shape: f32[8,48], index: 0, kind: input, shape index: {}]
  %s1 = inlined_call_operand.hbm [shape: bf16[48,128], index: 1, kind: input, shape index: {}]
  %s2 = inlined_call_operand.vmem [shape: f32[8,128], index: 2, kind: output, shape index: {0}]
  %s3 = inlined_call_operand.vmem [shape: f32[8,128], index: 3, kind: output, shape index: {1}]
  %4 = xla_tuple %s2, %s3
  %s5 = sld [smem:[#allocation0]]
  $region38: #{discriminator_forward.3} parent=0
    _
  %s7 = ssub.s32 1, %s5
  %s8 = scalar_select 0, %s7, %s5
  $region1: #{discriminator_forward.3} parent=0
    #allocation2 [shape = 'u8[4096]{0}', space=vmem, size = 0x1000, scoped, tag = 'input window, operand 0, single buffered']
    #allocation3 [shape = 's32[1]{0}', space=sflag, size = 0x4, scoped, tag = 'scoped memory for discriminator_forward.3']
    #allocation4 [shape = 'u8[12288]{0}', space=vmem, size = 0x3000, scoped, tag = 'input window, operand 1, single buffered']
    #allocation5 [shape = 's32[1]{0}', space=sflag, size = 0x4, scoped, tag = 'scoped memory for discriminator_forward.3']
    %9 = vsyncpa [#allocation3], 0
    %10 = vsyncpa [#allocation5], 0
    // Predicated region
    $region2: #{discriminator_forward.3} parent=1 // pred_check
      _
    $region3: #{discriminator_forward.3} parent=1 // pred_check_branch
      %12 = sbr.rel (0) target = $region5
    $region4: #{discriminator_forward.3} parent=1 // pred_region
      %14 = vsyncadd [#allocation3], 0
      %s16 = sshll.u32 %s0, 4
      %s17 = int_to_ptr.hbm [resolvable:$true] %s16
      %s18 = sshll.u32 [#allocation2], 4
      %s19 = int_to_ptr.vmem [resolvable:$true] %s18
      %21 = dma.hbm_to_vmem [thread:$0]  %s17, 128, %s19, [#allocation3]
    $region5: #{discriminator_forward.3} parent=1 // pred_fallthru
      _
    // Predicated region
    $region6: #{discriminator_forward.3} parent=1 // pred_check
      _
    $region7: #{discriminator_forward.3} parent=1 // pred_check_branch
      %23 = sbr.rel (0) target = $region9
    $region8: #{discriminator_forward.3} parent=1 // pred_region
      %25 = vsyncadd [#allocation5], 0
      %s26 = sshll.u32 %s1, 4
      %s27 = int_to_ptr.hbm [resolvable:$true] %s26
      %s28 = sshll.u32 [#allocation4], 4
      %s29 = int_to_ptr.vmem [resolvable:$true] %s28
      %34 = dma.hbm_to_vmem [thread:$0]  %s27, 384, %s29, [#allocation5], 64, 64, 4
    $region9: #{discriminator_forward.3} parent=1 // pred_fallthru
      _
    // Predicated region
    $region10: #{discriminator_forward.3} parent=1 // pred_check
      _
    $region11: #{discriminator_forward.3} parent=1 // pred_check_branch
      %36 = sbr.rel (0) target = $region13
    $region12: #{discriminator_forward.3} parent=1 // pred_region
      %38 = dma.done [#allocation3], 128
    $region13: #{discriminator_forward.3} parent=1 // pred_fallthru
      _
    // Predicated region
    $region14: #{discriminator_forward.3} parent=1 // pred_check
      _
    $region15: #{discriminator_forward.3} parent=1 // pred_check_branch
      %40 = sbr.rel (0) target = $region17
    $region16: #{discriminator_forward.3} parent=1 // pred_region
      %42 = dma.done [#allocation5], 384
    $region17: #{discriminator_forward.3} parent=1 // pred_fallthru
      _
    %p44 = scmp.eq.s32.totalorder 0, 0
    // Predicated region
    $region18: #{discriminator_forward.3} parent=1 // pred_check
      %p45 = pneg %p44
    $region19: #{discriminator_forward.3} parent=1 // pred_check_branch
      %47 = sbr.rel (%p45) target = $region21
    $region20: #{discriminator_forward.3} parent=1 // pred_region
      %48 = vst [vmem:[%s3] sm:$0xff] 0.0
    $region21: #{discriminator_forward.3} parent=1 // pred_fallthru
      _
    %v49 = vld [vmem:[#allocation2] sm:$0xff]
    %v50 = vpack.c.bf16 %v49, %v49
    %v51 = vld [vmem:[#allocation4] sm:$0xf]
    %v52 = vld [vmem:[#allocation4 + $0x4] sm:$0xf]
    %v53 = vld [vmem:[#allocation4 + $0x8] sm:$0xf]
    %v54 = vld [vmem:[#allocation4 + $0xc] sm:$0xf]
    %v55 = vld [vmem:[#allocation4 + $0x10] sm:$0xf]
    %v56 = vld [vmem:[#allocation4 + $0x14] sm:$0xf]
    %v63 = vunpack.c.l.b16 %v51
    %v64 = vunpack.c.l.b16 %v52
    %v65 = vunpack.c.l.b16 %v53
    %v66 = vunpack.c.l.b16 %v54
    %v67 = vunpack.c.l.b16 %v55
    %v68 = vunpack.c.l.b16 %v56
    %v69 = vpack.c.b16 %v64, %v63
    %v70 = vpack.c.b16 %v66, %v65
    %v71 = vpack.c.b16 %v68, %v67
    %vm75 = vcmask 392192
    %v77 = vsel %vm75, %v50, 0
    %79 = vmatpush.bf16.msra.mxu0 0
    %80 = vmatpush.bf16.msra.mxu0 0
    %81 = vmatpush.bf16.msra.mxu0 0
    %82 = vmatpush.bf16.msra.mxu0 0
    %83 = vmatpush.bf16.msra.mxu0 0
    %84 = vmatpush.bf16.msra.mxu0 %v71
    %85 = vmatpush.bf16.msra.mxu0 %v70
    %86 = vmatpush.bf16.msra.mxu0 %v69
    %87 = vmatmul.bf16.gmra.mxu0 %v77
    %v88 = vpop.f32.mrf.mxu0
    %v89 = vadd.f32 0.0, %v88
    %v90 = vpop.f32.mrf.mxu0
    %91 = vdwg.mxu0
    %v92 = vld [vmem:[%s3] sm:$0x1]
    %v93 = vrot.slane %v89, 4
    %v94 = vadd.f32 %v89, %v93
    %v95 = vrot.slane %v94, 2
    %v96 = vadd.f32 %v94, %v95
    %v97 = vrot.slane %v96, 1
    %v98 = vadd.f32 %v96, %v97
    %v99 = vadd.f32 %v92, %v98
    %100 = vst [vmem:[%s3] sm:$0x1] %v99
    %v101 = vld [vmem:[%s3 + $0x1] sm:$0x1]
    %v102 = vmul.f32 %v89, %v89
    %v103 = vrot.slane %v102, 4
    %v104 = vadd.f32 %v102, %v103
    %v105 = vrot.slane %v104, 2
    %v106 = vadd.f32 %v104, %v105
    %v107 = vrot.slane %v106, 1
    %v108 = vadd.f32 %v106, %v107
    %v109 = vadd.f32 %v101, %v108
    %110 = vst [vmem:[%s3 + $0x1] sm:$0x1] %v109
    %111 = vst [vmem:[%s2] sm:$0xff] %v89
    // Predicated region
    $region22: #{discriminator_forward.3} parent=1 // pred_check
      _
    $region23: #{discriminator_forward.3} parent=1 // pred_check_branch
      %113 = sbr.rel (0) target = $region25
    $region24: #{discriminator_forward.3} parent=1 // pred_region
      _
    $region25: #{discriminator_forward.3} parent=1 // pred_fallthru
      _
    // Predicated region
    $region26: #{discriminator_forward.3} parent=1 // pred_check
      _
    $region27: #{discriminator_forward.3} parent=1 // pred_check_branch
      %115 = sbr.rel (0) target = $region29
    $region28: #{discriminator_forward.3} parent=1 // pred_region
      _
    $region29: #{discriminator_forward.3} parent=1 // pred_fallthru
      _
    // Predicated region
    $region30: #{discriminator_forward.3} parent=1 // pred_check
      _
    $region31: #{discriminator_forward.3} parent=1 // pred_check_branch
      %117 = sbr.rel (0) target = $region33
    $region32: #{discriminator_forward.3} parent=1 // pred_region
      _
    $region33: #{discriminator_forward.3} parent=1 // pred_fallthru
      _
    // Predicated region
    $region34: #{discriminator_forward.3} parent=1 // pred_check
      _
    $region35: #{discriminator_forward.3} parent=1 // pred_check_branch
      %119 = sbr.rel (0) target = $region37
    $region36: #{discriminator_forward.3} parent=1 // pred_region
      _
    $region37: #{discriminator_forward.3} parent=1 // pred_fallthru
      _
    %120 = vsyncpa [#allocation3], 1
    %121 = vsyncpa [#allocation5], 1

</llo_original>
